<compile_context>
chip_gen: v6e
topology: v6e:2x2x1
jax: 0.10.0
libtpu: 0.0.40
codegen_flags: <defaults>
</compile_context>

<pallas_src>
import functools

import jax
import jax.numpy as jnp
from jax import lax
from jax.experimental import pallas as pl
from jax.experimental.pallas import tpu as pltpu


def _conv_bn_lrelu_kernel(p_ref, w_ref, gb_ref, o_ref, *, eps, slope):
    """Fused Conv2d('same') + BatchNorm2d(training stats) + LeakyReLU.

    Lane-dense layout: spatial (M = N*H*W) on lanes, channels on sublanes.
      p_ref:  (K*K*Cin, M)    im2col patches (tap-major, cin-minor rows)
      w_ref:  (Cout, K*K*Cin) conv weights, reordered to match patch rows
      gb_ref: (Cout, 2)       packed BN params: [:, 0]=gamma, [:, 1]=beta
      o_ref:  (Cout, M)       output
    """
    m = o_ref.shape[1]

    # --- convolution: one MXU matmul over all taps, f32 accumulation --------
    y = jnp.dot(w_ref[...], p_ref[...],
                preferred_element_type=jnp.float32)            # (Cout, M)
    # (conv bias intentionally omitted: it cancels exactly under BN mean sub)

    # --- BatchNorm2d (training mode), single-pass stats + fused affine ------
    inv_m = 1.0 / m
    s1 = jnp.sum(y, axis=1, keepdims=True)                     # (Cout, 1)
    s2 = jnp.sum(y * y, axis=1, keepdims=True)                 # (Cout, 1)
    mean = s1 * inv_m
    var = jnp.maximum(s2 * inv_m - mean * mean, 0.0)           # clamp cancellation
    gb = gb_ref[...]                                           # (Cout, 2)
    scale = gb[:, 0:1] * lax.rsqrt(var + eps)                  # rsqrt -> EUP slot
    shift = gb[:, 1:2] - mean * scale
    y = y * scale + shift

    # --- LeakyReLU (negative_slope = 0.01): single vmax ----------------------
    y = jnp.maximum(y, slope * y)

    o_ref[...] = y.astype(o_ref.dtype)                         # unmasked lane-dense store


def basic_convolution(x_nchw, conv_w, conv_b, bn_gamma, bn_beta,
                      *, eps=1e-5, slope=0.01, compute_dtype=jnp.float32):
    """x_nchw: (N, Cin, H, W); conv_w: (Cout, Cin, K, K) -- PyTorch layouts.

    `compute_dtype=jnp.bfloat16` is the recommended setting for production
    sizes on v6e/v7x (native-bf16 MXU, half the patches bytes); kept f32 here
    so the toy-size correctness check stays tight.
    """
    N, Cin, H, W = x_nchw.shape
    Cout, _, K, _ = conv_w.shape
    assert K % 2 == 1, "'same' padding implemented here only for odd kernel size"
    p = K // 2
    M = N * H * W

    # ---- layout plumbing in plain JAX (outside the kernel) -----------------
    # One transpose + one pad, then 9 static slices stacked:
    #   patches[(kh*K + kw)*Cin + cin, n*H*W + h*W + w] = x_pad[cin, n, h+kh, w+kw]
    x_cnhw = jnp.transpose(x_nchw, (1, 0, 2, 3))                # (Cin, N, H, W)
    x_pad = jnp.pad(x_cnhw, ((0, 0), (0, 0), (p, p), (p, p)))
    taps = [x_pad[:, :, kh:kh + H, kw:kw + W]                   # (Cin, N, H, W)
            for kh in range(K) for kw in range(K)]
    patches = jnp.stack(taps, axis=0).reshape(K * K * Cin, M).astype(compute_dtype)
    # TODO(synk): for production sizes, fold the taps into the kernel (keep the
    # padded input resident, accumulate 9 shifted matmuls) to kill the 9x im2col
    # HBM inflation; at this toy size the single-matmul form is strictly better.

    # Weights reordered to match patch row ordering: (Cout, kh, kw, cin).
    w2d = (jnp.transpose(conv_w, (0, 2, 3, 1))
           .reshape(Cout, K * K * Cin).astype(compute_dtype))

    # BN gamma/beta packed into a single side input -> one DMA instead of three.
    # conv_b is NOT passed to the kernel: bias before training-mode BN is a
    # mathematical no-op on the output.
    del conv_b
    gb = jnp.stack([bn_gamma, bn_beta], axis=1).astype(jnp.float32)   # (Cout, 2)

    kernel = functools.partial(_conv_bn_lrelu_kernel, eps=eps, slope=slope)

    vmem = pl.BlockSpec(memory_space=pltpu.MemorySpace.VMEM)
    out = pl.pallas_call(
        kernel,
        out_shape=jax.ShapeDtypeStruct((Cout, M), jnp.float32),
        in_specs=[vmem, vmem, vmem],
        out_specs=vmem,
    )(patches, w2d, gb)

    # (Cout, N*H*W) -> (N, Cout, H, W)
    return jnp.transpose(out.reshape(Cout, N, H, W), (1, 0, 2, 3))


def _reference(x_nchw, conv_w, conv_b, bn_gamma, bn_beta, eps=1e-5, slope=0.01):
    """Pure-JAX reference mirroring PyTorch semantics (bias included)."""
    y = lax.conv_general_dilated(
        x_nchw, conv_w, window_strides=(1, 1), padding=((1, 1), (1, 1)),
        dimension_numbers=("NCHW", "OIHW", "NCHW"))
    y = y + conv_b[None, :, None, None]
    mean = jnp.mean(y, axis=(0, 2, 3), keepdims=True)
    var = jnp.mean((y - mean) ** 2, axis=(0, 2, 3), keepdims=True)
    y = (y - mean) * lax.rsqrt(var + eps)
    y = y * bn_gamma[None, :, None, None] + bn_beta[None, :, None, None]
    return jnp.where(y >= 0, y, slope * y)


if __name__ == "__main__":
    N, Cin, Cout, H, W, K = 2, 4, 8, 16, 16, 3

    key = jax.random.PRNGKey(0)
    kx, kw, kb = jax.random.split(key, 3)

    x = jax.random.normal(kx, (N, Cin, H, W), dtype=jnp.float32)

    # Deterministic parameter init (shapes per nn.Conv2d / nn.BatchNorm2d).
    fan_in = Cin * K * K
    bound = 1.0 / (fan_in ** 0.5)
    conv_w = jax.random.uniform(kw, (Cout, Cin, K, K), jnp.float32, -bound, bound)
    conv_b = jax.random.uniform(kb, (Cout,), jnp.float32, -bound, bound)
    bn_gamma = jnp.ones((Cout,), jnp.float32)   # BatchNorm2d default weight
    bn_beta = jnp.zeros((Cout,), jnp.float32)   # BatchNorm2d default bias

    out = basic_convolution(x, conv_w, conv_b, bn_gamma, bn_beta)
    out = jax.block_until_ready(out)

    ref = _reference(x, conv_w, conv_b, bn_gamma, bn_beta)
    assert out.shape == (N, Cout, H, W)
    assert jnp.allclose(out, ref, atol=1e-3, rtol=1e-3), "mismatch vs reference"

    print("KERNEL_OK")
</pallas_src>

<mosaic_0001>
module attributes {stable_mosaic.version = 11 : i64} {
  func.func @_conv_bn_lrelu_kernel(%arg0: memref<36x512xf32, #tpu.memory_space<vmem>>, %arg1: memref<8x36xf32, #tpu.memory_space<vmem>>, %arg2: memref<8x2xf32, #tpu.memory_space<vmem>>, %arg3: memref<8x512xf32, #tpu.memory_space<vmem>>) attributes {dimension_semantics = [], scalar_prefetch = 0 : i64, scratch_operands = 0 : i64, tpu.core_type = #tpu.core_type<tc>} {
    %c0 = arith.constant 0 : index
    %c0_0 = arith.constant 0 : index
    %0 = vector.load %arg1[%c0, %c0_0] : memref<8x36xf32, #tpu.memory_space<vmem>>, vector<8x36xf32>
    %c0_1 = arith.constant 0 : index
    %c0_2 = arith.constant 0 : index
    %1 = vector.load %arg0[%c0_1, %c0_2] : memref<36x512xf32, #tpu.memory_space<vmem>>, vector<36x512xf32>
    %cst = arith.constant dense<0.000000e+00> : vector<8x512xf32>
    %2 = tpu.matmul %0, %1, %cst {dimension_numbers = #tpu.dot_dimension_numbers<[1], [0], [0], [1], [0, 0, 1, 1], [], []>} : vector<8x36xf32>, vector<36x512xf32>, vector<8x512xf32> -> vector<8x512xf32>
    %cst_3 = arith.constant dense<0.000000e+00> : vector<8xf32>
    %3 = vector.multi_reduction <add>, %2, %cst_3 [1] : vector<8x512xf32> to vector<8xf32>
    %4 = vector.shape_cast %3 : vector<8xf32> to vector<8x1xf32>
    %5 = arith.mulf %2, %2 : vector<8x512xf32>
    %cst_4 = arith.constant dense<0.000000e+00> : vector<8xf32>
    %6 = vector.multi_reduction <add>, %5, %cst_4 [1] : vector<8x512xf32> to vector<8xf32>
    %7 = vector.shape_cast %6 : vector<8xf32> to vector<8x1xf32>
    %cst_5 = arith.constant 0.001953125 : f32
    %8 = vector.broadcast %cst_5 : f32 to vector<8x1xf32>
    %9 = arith.mulf %4, %8 : vector<8x1xf32>
    %cst_6 = arith.constant 0.001953125 : f32
    %10 = vector.broadcast %cst_6 : f32 to vector<8x1xf32>
    %11 = arith.mulf %7, %10 : vector<8x1xf32>
    %12 = arith.mulf %9, %9 : vector<8x1xf32>
    %13 = arith.subf %11, %12 : vector<8x1xf32>
    %cst_7 = arith.constant 0.000000e+00 : f32
    %14 = vector.broadcast %cst_7 : f32 to vector<8x1xf32>
    %15 = arith.maximumf %13, %14 : vector<8x1xf32>
    %c0_8 = arith.constant 0 : index
    %c0_9 = arith.constant 0 : index
    %16 = vector.load %arg2[%c0_8, %c0_9] : memref<8x2xf32, #tpu.memory_space<vmem>>, vector<8x2xf32>
    %17 = vector.extract_strided_slice %16 {offsets = [0, 0], sizes = [8, 1], strides = [1, 1]} : vector<8x2xf32> to vector<8x1xf32>
    %cst_10 = arith.constant 9.99999974E-6 : f32
    %18 = vector.broadcast %cst_10 : f32 to vector<8x1xf32>
    %19 = arith.addf %15, %18 : vector<8x1xf32>
    %20 = math.rsqrt %19 : vector<8x1xf32>
    %21 = arith.mulf %17, %20 : vector<8x1xf32>
    %22 = vector.extract_strided_slice %16 {offsets = [0, 1], sizes = [8, 1], strides = [1, 1]} : vector<8x2xf32> to vector<8x1xf32>
    %23 = arith.mulf %9, %21 : vector<8x1xf32>
    %24 = arith.subf %22, %23 : vector<8x1xf32>
    %25 = vector.broadcast %21 : vector<8x1xf32> to vector<8x512xf32>
    %26 = arith.mulf %2, %25 : vector<8x512xf32>
    %27 = vector.broadcast %24 : vector<8x1xf32> to vector<8x512xf32>
    %28 = arith.addf %26, %27 : vector<8x512xf32>
    %cst_11 = arith.constant 0.00999999977 : f32
    %29 = vector.broadcast %cst_11 : f32 to vector<8x512xf32>
    %30 = arith.mulf %29, %28 : vector<8x512xf32>
    %31 = arith.maximumf %28, %30 : vector<8x512xf32>
    %c0_12 = arith.constant 0 : index
    %c0_13 = arith.constant 0 : index
    %32 = vector.load %arg3[%c0_12, %c0_13] : memref<8x512xf32, #tpu.memory_space<vmem>>, vector<8x512xf32>
    tpu.vector_store %arg3[%c0_12, %c0_13], %31 {strides = array<i32>} : memref<8x512xf32, #tpu.memory_space<vmem>>, vector<8x512xf32>,
    return
  }
}

</mosaic_0001>

<llo_original>
// kernel: tpu_custom_call.1
$region0: #{tpu_custom_call.1}
  #allocation0 [shape = 'u32[]', space=smem, size = 0x4, offset = 0x4, fixed_abs, tag = 'smem constant byte address 0x4 - core index']
  #allocation1 [shape = 'u32[144,128]{1,0:T(1,128)}', space=vmem, size = 0x12000, scoped, tag = 'internal scratch']
  %s0 = inlined_call_operand.hbm [shape: f32[36,512], index: 0, kind: input, shape index: {}]
  %s1 = inlined_call_operand.vmem [shape: f32[8,36], index: 1, kind: input, shape index: {}]
  %s2 = inlined_call_operand.vmem [shape: f32[8,2], index: 2, kind: input, shape index: {}]
  %s3 = inlined_call_operand.hbm [shape: f32[8,512], index: 3, kind: output, shape index: {}]
  %s4 = sld [smem:[#allocation0]]
  $region26: #{tpu_custom_call.1} parent=0
    _
  %s6 = ssub.s32 1, %s4
  %s7 = scalar_select 0, %s6, %s4
  $region1: #{tpu_custom_call.1} parent=0
    #allocation2 [shape = 'u8[81920]{0}', space=vmem, size = 0x14000, scoped, tag = 'input window, operand 0, single buffered']
    #allocation3 [shape = 's32[1]{0}', space=sflag, size = 0x4, scoped, tag = 'scoped memory for tpu_custom_call.1']
    #allocation4 [shape = 's32[1]{0}', space=sflag, size = 0x4, scoped, tag = 'scoped memory for tpu_custom_call.1']
    #allocation5 [shape = 'u8[16384]{0}', space=vmem, size = 0x4000, scoped, tag = 'output window, operand 0, single buffered']
    %8 = vsyncpa [#allocation3], 0
    %9 = vsyncpa [#allocation4], 0
    // Predicated region
    $region2: #{tpu_custom_call.1} parent=1 // pred_check
      _
    $region3: #{tpu_custom_call.1} parent=1 // pred_check_branch
      %11 = sbr.rel (0) target = $region5
    $region4: #{tpu_custom_call.1} parent=1 // pred_region
      %s13 = ssub.s32 2560, 2560
      %14 = vsyncadd [#allocation3], %s13
      %s15 = sshll.u32 [#allocation2], 4
      %s16 = int_to_ptr.vmem [resolvable:$true] %s15
      %21 = dma.hbm_to_vmem [thread:$0]  %s0, 2560, %s16, [#allocation3], 512, 512, 32
    $region5: #{tpu_custom_call.1} parent=1 // pred_fallthru
      _
    // Predicated region
    $region6: #{tpu_custom_call.1} parent=1 // pred_check
      _
    $region7: #{tpu_custom_call.1} parent=1 // pred_check_branch
      %23 = sbr.rel (0) target = $region9
    $region8: #{tpu_custom_call.1} parent=1 // pred_region
      _
    $region9: #{tpu_custom_call.1} parent=1 // pred_fallthru
      _
    // Predicated region
    $region10: #{tpu_custom_call.1} parent=1 // pred_check
      _
    $region11: #{tpu_custom_call.1} parent=1 // pred_check_branch
      %25 = sbr.rel (0) target = $region13
    $region12: #{tpu_custom_call.1} parent=1 // pred_region
      _
    $region13: #{tpu_custom_call.1} parent=1 // pred_fallthru
      _
    // Predicated region
    $region14: #{tpu_custom_call.1} parent=1 // pred_check
      _
    $region15: #{tpu_custom_call.1} parent=1 // pred_check_branch
      %27 = sbr.rel (0) target = $region17
    $region16: #{tpu_custom_call.1} parent=1 // pred_region
      %28 = dma.done [#allocation3], 2560
    $region17: #{tpu_custom_call.1} parent=1 // pred_fallthru
      _
    %v29 = vld [vmem:[%s1] sm:$0xff]
    %v30 = vld [vmem:[#allocation2] sm:$0xff]
    %v31 = vld [vmem:[#allocation2 + $0x8] sm:$0xff]
    %v32 = vld [vmem:[#allocation2 + $0x10] sm:$0xff]
    %v33 = vld [vmem:[#allocation2 + $0x18] sm:$0xff]
    %v34 = vld [vmem:[#allocation2 + $0x20] sm:$0xff]
    %v35 = vld [vmem:[#allocation2 + $0x28] sm:$0xff]
    %v36 = vld [vmem:[#allocation2 + $0x30] sm:$0xff]
    %v37 = vld [vmem:[#allocation2 + $0x38] sm:$0xff]
    %v38 = vld [vmem:[#allocation2 + $0x40] sm:$0xff]
    %v39 = vld [vmem:[#allocation2 + $0x48] sm:$0xff]
    %v40 = vld [vmem:[#allocation2 + $0x50] sm:$0xff]
    %v41 = vld [vmem:[#allocation2 + $0x58] sm:$0xff]
    %v42 = vld [vmem:[#allocation2 + $0x60] sm:$0xff]
    %v43 = vld [vmem:[#allocation2 + $0x68] sm:$0xff]
    %v44 = vld [vmem:[#allocation2 + $0x70] sm:$0xff]
    %v45 = vld [vmem:[#allocation2 + $0x78] sm:$0xff]
    %v46 = vld [vmem:[#allocation2 + $0x80] sm:$0xf]
    %v47 = vld [vmem:[#allocation2 + $0x88] sm:$0xf]
    %v48 = vld [vmem:[#allocation2 + $0x90] sm:$0xf]
    %v49 = vld [vmem:[#allocation2 + $0x98] sm:$0xf]
    %vm50 = vcmask 293888
    %v52 = vsel %vm50, %v29, 0
    %vm54 = vcmask 1043456
    %v56 = vsel %vm54, %v46, 0
    %v59 = vsel %vm54, %v47, 0
    %v62 = vsel %vm54, %v48, 0
    %v65 = vsel %vm54, %v49, 0
    %67 = vmatprep.subr.mxu0 0.0
    %68 = vmatpush1.msra.mxu0 0.0
    %69 = vmatprep.subr.mxu0 0.0
    %70 = vmatpush1.msra.mxu0 0.0
    %71 = vmatprep.subr.mxu0 0.0
    %72 = vmatpush1.msra.mxu0 0.0
    %73 = vmatprep.subr.mxu0 0.0
    %74 = vmatpush1.msra.mxu0 0.0
    %75 = vmatprep.subr.mxu0 0.0
    %76 = vmatpush1.msra.mxu0 0.0
    %77 = vmatprep.subr.mxu0 0.0
    %78 = vmatpush1.msra.mxu0 0.0
    %79 = vmatprep.subr.mxu0 0.0
    %80 = vmatpush1.msra.mxu0 0.0
    %81 = vmatprep.subr.mxu0 0.0
    %82 = vmatpush1.msra.mxu0 0.0
    %83 = vmatprep.subr.mxu0 0.0
    %84 = vmatpush1.msra.mxu0 0.0
    %85 = vmatprep.subr.mxu0 0.0
    %86 = vmatpush1.msra.mxu0 0.0
    %87 = vmatprep.subr.mxu0 0.0
    %88 = vmatpush1.msra.mxu0 0.0
    %89 = vmatprep.subr.mxu0 %v59
    %90 = vmatpush1.msra.mxu0 %v56
    %91 = vmatprep.subr.mxu0 %v43
    %92 = vmatpush1.msra.mxu0 %v42
    %93 = vmatprep.subr.mxu0 %v39
    %94 = vmatpush1.msra.mxu0 %v38
    %95 = vmatprep.subr.mxu0 %v35
    %96 = vmatpush1.msra.mxu0 %v34
    %97 = vmatprep.subr.mxu0 %v31
    %98 = vmatpush1.msra.mxu0 %v30
    %99 = vmatprep.subr.mxu0 0.0
    %100 = vmatpush2.msra.mxu0 0.0
    %101 = vmatprep.subr.mxu0 0.0
    %102 = vmatpush2.msra.mxu0 0.0
    %103 = vmatprep.subr.mxu0 0.0
    %104 = vmatpush2.msra.mxu0 0.0
    %105 = vmatprep.subr.mxu0 0.0
    %106 = vmatpush2.msra.mxu0 0.0
    %107 = vmatprep.subr.mxu0 0.0
    %108 = vmatpush2.msra.mxu0 0.0
    %109 = vmatprep.subr.mxu0 0.0
    %110 = vmatpush2.msra.mxu0 0.0
    %111 = vmatprep.subr.mxu0 0.0
    %112 = vmatpush2.msra.mxu0 0.0
    %113 = vmatprep.subr.mxu0 0.0
    %114 = vmatpush2.msra.mxu0 0.0
    %115 = vmatprep.subr.mxu0 0.0
    %116 = vmatpush2.msra.mxu0 0.0
    %117 = vmatprep.subr.mxu0 0.0
    %118 = vmatpush2.msra.mxu0 0.0
    %119 = vmatprep.subr.mxu0 0.0
    %120 = vmatpush2.msra.mxu0 0.0
    %121 = vmatprep.subr.mxu0 0.0
    %122 = vmatpush2.msra.mxu0 0.0
    %123 = vmatprep.subr.mxu0 0.0
    %124 = vmatpush2.msra.mxu0 0.0
    %125 = vmatprep.subr.mxu0 0.0
    %126 = vmatpush2.msra.mxu0 0.0
    %127 = vmatprep.subr.mxu0 0.0
    %128 = vmatpush2.msra.mxu0 0.0
    %129 = vmatprep.subr.mxu0 0.0
    %130 = vmatpush2.msra.mxu0 0.0
    %131 = vmatprep.mubr.f32.mxu0 0.0
    %132 = vmatmul.mubr.f32.gmra.mxu0 %v52
    %v133 = vpop.f32.mrf.mxu0
    %v134 = vadd.f32 0.0, %v133
    %v135 = vpop.f32.mrf.mxu0
    %v136 = vadd.f32 0.0, %v135
    %137 = vdwg.mxu0
    %138 = vmatprep.subr.mxu0 0.0
    %139 = vmatpush1.msra.mxu0 0.0
    %140 = vmatprep.subr.mxu0 0.0
    %141 = vmatpush1.msra.mxu0 0.0
    %142 = vmatprep.subr.mxu0 0.0
    %143 = vmatpush1.msra.mxu0 0.0
    %144 = vmatprep.subr.mxu0 0.0
    %145 = vmatpush1.msra.mxu0 0.0
    %146 = vmatprep.subr.mxu0 0.0
    %147 = vmatpush1.msra.mxu0 0.0
    %148 = vmatprep.subr.mxu0 0.0
    %149 = vmatpush1.msra.mxu0 0.0
    %150 = vmatprep.subr.mxu0 0.0
    %151 = vmatpush1.msra.mxu0 0.0
    %152 = vmatprep.subr.mxu0 0.0
    %153 = vmatpush1.msra.mxu0 0.0
    %154 = vmatprep.subr.mxu0 0.0
    %155 = vmatpush1.msra.mxu0 0.0
    %156 = vmatprep.subr.mxu0 0.0
    %157 = vmatpush1.msra.mxu0 0.0
    %158 = vmatprep.subr.mxu0 0.0
    %159 = vmatpush1.msra.mxu0 0.0
    %160 = vmatprep.subr.mxu0 %v65
    %161 = vmatpush1.msra.mxu0 %v62
    %162 = vmatprep.subr.mxu0 %v45
    %163 = vmatpush1.msra.mxu0 %v44
    %164 = vmatprep.subr.mxu0 %v41
    %165 = vmatpush1.msra.mxu0 %v40
    %166 = vmatprep.subr.mxu0 %v37
    %167 = vmatpush1.msra.mxu0 %v36
    %168 = vmatprep.subr.mxu0 %v33
    %169 = vmatpush1.msra.mxu0 %v32
    %170 = vmatprep.subr.mxu0 0.0
    %171 = vmatpush2.msra.mxu0 0.0
    %172 = vmatprep.subr.mxu0 0.0
    %173 = vmatpush2.msra.mxu0 0.0
    %174 = vmatprep.subr.mxu0 0.0
    %175 = vmatpush2.msra.mxu0 0.0
    %176 = vmatprep.subr.mxu0 0.0
    %177 = vmatpush2.msra.mxu0 0.0
    %178 = vmatprep.subr.mxu0 0.0
    %179 = vmatpush2.msra.mxu0 0.0
    %180 = vmatprep.subr.mxu0 0.0
    %181 = vmatpush2.msra.mxu0 0.0
    %182 = vmatprep.subr.mxu0 0.0
    %183 = vmatpush2.msra.mxu0 0.0
    %184 = vmatprep.subr.mxu0 0.0
    %185 = vmatpush2.msra.mxu0 0.0
    %186 = vmatprep.subr.mxu0 0.0
    %187 = vmatpush2.msra.mxu0 0.0
    %188 = vmatprep.subr.mxu0 0.0
    %189 = vmatpush2.msra.mxu0 0.0
    %190 = vmatprep.subr.mxu0 0.0
    %191 = vmatpush2.msra.mxu0 0.0
    %192 = vmatprep.subr.mxu0 0.0
    %193 = vmatpush2.msra.mxu0 0.0
    %194 = vmatprep.subr.mxu0 0.0
    %195 = vmatpush2.msra.mxu0 0.0
    %196 = vmatprep.subr.mxu0 0.0
    %197 = vmatpush2.msra.mxu0 0.0
    %198 = vmatprep.subr.mxu0 0.0
    %199 = vmatpush2.msra.mxu0 0.0
    %200 = vmatprep.subr.mxu0 0.0
    %201 = vmatpush2.msra.mxu0 0.0
    %202 = vmatprep.mubr.f32.mxu0 0.0
    %203 = vmatmul.mubr.f32.gmra.mxu0 %v52
    %v204 = vpop.f32.mrf.mxu0
    %v205 = vadd.f32 0.0, %v204
    %v206 = vpop.f32.mrf.mxu0
    %v207 = vadd.f32 0.0, %v206
    %208 = vdwg.mxu0
    %v209 = vadd.f32 %v134, %v136
    %v210 = vadd.f32 %v209, %v205
    %v211 = vadd.f32 %v210, %v207
    %212 = vadd.xlane.f32.xlu0 %v211
    %v213 = vpop.xlane.xlu0 %212
    %v214 = vmul.f32 %v134, %v134
    %v215 = vmul.f32 %v136, %v136
    %v216 = vmul.f32 %v205, %v205
    %v217 = vmul.f32 %v207, %v207
    %v218 = vadd.f32 %v214, %v215
    %v219 = vadd.f32 %v218, %v216
    %v220 = vadd.f32 %v219, %v217
    %221 = vadd.xlane.f32.xlu0 %v220
    %v222 = vpop.xlane.xlu0 %221
    %v223 = vmul.f32 %v213, 0.001953125
    %v224 = vmul.f32 %v222, 0.001953125
    %v225 = vmul.f32 %v223, %v223
    %v226 = vsub.f32 %v224, %v225
    %v227 = vmax.f32 %v226, 0.0
    %v228 = vld [vmem:[%s2] sm:$0xff]
    %v229 = vadd.f32 %v227, 1e-05
    %v230 = vrsqrt.pop %v229
    %v231 = vmul.f32 %v228, %v230
    %v232 = vmul.f32 %v223, %v231
    %234 = vrot.lane.b32.xlu0 %v232, 1
    %v235 = vpop.permute.xlu0 %234
    %v237 = vsub.f32 %v228, %v235
    %239 = vset.pattern.permute.xlu0 0
    %240 = vperm.xlu0 %239, %v231
    %v241 = vpop.permute.xlu0 %240
    %v243 = vmul.f32 %v134, %v241
    %v244 = vmul.f32 %v136, %v241
    %v245 = vmul.f32 %v205, %v241
    %v246 = vmul.f32 %v207, %v241
    %248 = vset.pattern.permute.xlu0 1
    %249 = vperm.xlu0 %248, %v237
    %v250 = vpop.permute.xlu0 %249
    %v252 = vadd.f32 %v243, %v250
    %v253 = vadd.f32 %v244, %v250
    %v254 = vadd.f32 %v245, %v250
    %v255 = vadd.f32 %v246, %v250
    %v256 = vmul.f32 %v252, 0.01
    %v257 = vmul.f32 %v253, 0.01
    %v258 = vmul.f32 %v254, 0.01
    %v259 = vmul.f32 %v255, 0.01
    %v260 = vmax.f32 %v252, %v256
    %v261 = vmax.f32 %v253, %v257
    %v262 = vmax.f32 %v254, %v258
    %v263 = vmax.f32 %v255, %v259
    %264 = vst [vmem:[#allocation5] sm:$0xff] %v260
    %265 = vst [vmem:[#allocation5 + $0x8] sm:$0xff] %v261
    %266 = vst [vmem:[#allocation5 + $0x10] sm:$0xff] %v262
    %267 = vst [vmem:[#allocation5 + $0x18] sm:$0xff] %v263
    // Predicated region
    $region18: #{tpu_custom_call.1} parent=1 // pred_check
      _
    $region19: #{tpu_custom_call.1} parent=1 // pred_check_branch
      %269 = sbr.rel (0) target = $region21
    $region20: #{tpu_custom_call.1} parent=1 // pred_region
      %s271 = ssub.s32 512, 512
      %272 = vsyncadd [#allocation4], %s271
      %s274 = sshll.u32 [#allocation5], 4
      %s275 = int_to_ptr.vmem [resolvable:$true] %s274
      %277 = dma.vmem_to_hbm [thread:$0]  %s275, 512, %s3, [#allocation4]
    $region21: #{tpu_custom_call.1} parent=1 // pred_fallthru
      _
    // Predicated region
    $region22: #{tpu_custom_call.1} parent=1 // pred_check
      _
    $region23: #{tpu_custom_call.1} parent=1 // pred_check_branch
      %279 = sbr.rel (0) target = $region25
    $region24: #{tpu_custom_call.1} parent=1 // pred_region
      %280 = dma.done [#allocation4], 512
    $region25: #{tpu_custom_call.1} parent=1 // pred_fallthru
      _
    %281 = vsyncpa [#allocation3], 1
    %282 = vsyncpa [#allocation4], 1

</llo_original>
